<compile_context>
chip_gen: v5e
topology: v5e:2x2
jax: 0.10.0
libtpu: 0.0.40
codegen_flags: <defaults>
</compile_context>

<pallas_src>
import jax
import jax.numpy as jnp
from jax.experimental import pallas as pl
from jax.experimental.pallas import tpu as pltpu


def _relus005_kernel(x_ref, o_ref):
    x = x_ref[...]
    shift = jnp.asarray(0.05, dtype=x.dtype)
    o_ref[...] = jnp.maximum(x + shift, jnp.zeros_like(x)) - shift


_LANE_CANDIDATES = (4096, 2048, 1024, 512, 256, 128)


def relus005(x: jax.Array, *, block_bytes: int = 2 * 1024 * 1024) -> jax.Array:
    """Elementwise relu(x + 0.05) - 0.05 for any-shaped input (e.g. NCHW)."""
    orig_shape = x.shape
    dtype = x.dtype
    n = x.size
    if n == 0:
        return x

    # Pick the widest lane-dense slab width that divides n exactly (no padding
    # copy).  Prefer widths that still leave >= 8 rows (full sublane tiles).
    lanes = None
    for c in _LANE_CANDIDATES:
        if n % c == 0 and n // c >= 8:
            lanes = c
            break
    if lanes is None:
        for c in _LANE_CANDIDATES:
            if n % c == 0:
                lanes = c
                break

    flat = jnp.ravel(x)
    padded = False
    if lanes is None:
        # Rare fallback: n not a multiple of 128 -> pad the flat tail only.
        lanes = 128
        pad = (-n) % lanes
        flat = jnp.concatenate([flat, jnp.zeros((pad,), dtype=dtype)])
        padded = True

    rows = flat.size // lanes
    slab = flat.reshape(rows, lanes)

    # ~block_bytes per block, rows a multiple of 8; full-array block if smaller.
    itemsize = jnp.dtype(dtype).itemsize
    tile_rows = max(8, (block_bytes // (lanes * itemsize)) // 8 * 8)
    tile_rows = min(tile_rows, rows)

    grid = (pl.cdiv(rows, tile_rows),)
    out = pl.pallas_call(
        _relus005_kernel,
        out_shape=jax.ShapeDtypeStruct((rows, lanes), dtype),
        grid_spec=pltpu.PrefetchScalarGridSpec(
            num_scalar_prefetch=0,
            grid=grid,
            in_specs=[pl.BlockSpec((tile_rows, lanes), lambda i: (i, 0))],
            out_specs=pl.BlockSpec((tile_rows, lanes), lambda i: (i, 0)),
        ),
        input_output_aliases={0: 0},
        compiler_params=pltpu.CompilerParams(
            dimension_semantics=("parallel",),
        ),
    )(slab)

    if padded:
        out = out.reshape(-1)[:n]
    return out.reshape(orig_shape)


if __name__ == "__main__":
    key = jax.random.PRNGKey(0)
    # NCHW input, small shape consistent with a denoiser activation.
    x = jax.random.normal(key, (2, 4, 16, 16), dtype=jnp.float32)

    y = relus005(x)
    y = jax.block_until_ready(y)

    # Reference check against plain JAX.
    y_ref = jnp.maximum(x + 0.05, 0.0) - 0.05
    assert y.shape == x.shape and y.dtype == x.dtype
    assert jnp.allclose(y, y_ref, atol=1e-6), "mismatch vs reference"

    print("KERNEL_OK")
</pallas_src>

<mosaic_0001>
module attributes {stable_mosaic.version = 11 : i64} {
  func.func @_relus005_kernel(%arg0: i32, %arg1: memref<8x256xf32, #tpu.memory_space<vmem>>, %arg2: memref<8x256xf32, #tpu.memory_space<vmem>>) attributes {dimension_semantics = [#tpu.dimension_semantics<parallel>], iteration_bounds = array<i64: 1>, scalar_prefetch = 0 : i64, scratch_operands = 0 : i64, tpu.core_type = #tpu.core_type<tc>, window_params = [{transform_indices = @transform_0, window_bounds = array<i64: 8, 256>}, {transform_indices = @transform_1, window_bounds = array<i64: 8, 256>}]} {
    %c0 = arith.constant 0 : index
    %c0_0 = arith.constant 0 : index
    %0 = vector.load %arg1[%c0, %c0_0] : memref<8x256xf32, #tpu.memory_space<vmem>>, vector<8x256xf32>
    %cst = arith.constant 5.000000e-02 : f32
    %1 = vector.broadcast %cst : f32 to vector<8x256xf32>
    %2 = arith.addf %0, %1 : vector<8x256xf32>
    %cst_1 = arith.constant 0.000000e+00 : f32
    %3 = vector.broadcast %cst_1 : f32 to vector<8x256xf32>
    %4 = arith.maximumf %2, %3 : vector<8x256xf32>
    %cst_2 = arith.constant 5.000000e-02 : f32
    %5 = vector.broadcast %cst_2 : f32 to vector<8x256xf32>
    %6 = arith.subf %4, %5 : vector<8x256xf32>
    %c0_3 = arith.constant 0 : index
    %c0_4 = arith.constant 0 : index
    %7 = vector.load %arg2[%c0_3, %c0_4] : memref<8x256xf32, #tpu.memory_space<vmem>>, vector<8x256xf32>
    tpu.vector_store %arg2[%c0_3, %c0_4], %6 {strides = array<i32>} : memref<8x256xf32, #tpu.memory_space<vmem>>, vector<8x256xf32>,
    return
  }
  func.func @transform_0(%arg0: i32) -> (i32, i32) {
    %c0_i32 = arith.constant 0 : i32
    %c0_i32_0 = arith.constant 0 : i32
    return %arg0, %c0_i32 : i32, i32
  }
  func.func @transform_1(%arg0: i32) -> (i32, i32) {
    %c0_i32 = arith.constant 0 : i32
    %c0_i32_0 = arith.constant 0 : i32
    return %arg0, %c0_i32 : i32, i32
  }
}

</mosaic_0001>

<llo_original>
// kernel: tpu_custom_call.1
$region0: #{tpu_custom_call.1}
  #allocation0 [shape = 'u32[]', space=smem, size = 0x4, offset = 0x4, fixed_abs, tag = 'smem constant byte address 0x4 - core index']
  #allocation1 [shape = 'u32[72,128]{1,0:T(1,128)}', space=vmem, size = 0x9000, scoped, tag = 'internal scratch']
  %s0 = inlined_call_operand.hbm [shape: f32[8,256], index: 0, kind: input, shape index: {}, may-alias: {0,1}]
  %s1 = inlined_call_operand.hbm [shape: f32[8,256], index: 1, kind: output, shape index: {}, may-alias: {0,1}]
  %s2 = sld [smem:[#allocation0]]
  $region18: #{tpu_custom_call.1} parent=0
    _
  %s4 = ssub.s32 1, %s2
  %s5 = scalar_select 0, %s4, %s2
  $region1: #{tpu_custom_call.1} parent=0
    #allocation2 [shape = 'u8[8192]{0}', space=vmem, size = 0x2000, scoped, tag = 'input window, operand 0, single buffered']
    #allocation3 [shape = 's32[1]{0}', space=sflag, size = 0x4, scoped, tag = 'scoped memory for tpu_custom_call.1']
    #allocation4 [shape = 's32[1]{0}', space=sflag, size = 0x4, scoped, tag = 'scoped memory for tpu_custom_call.1']
    #allocation5 [shape = 'u8[8192]{0}', space=vmem, size = 0x2000, scoped, tag = 'output window, operand 0, single buffered']
    %6 = vsyncpa [#allocation3], 0
    %7 = vsyncpa [#allocation4], 0
    // Predicated region
    $region2: #{tpu_custom_call.1} parent=1 // pred_check
      _
    $region3: #{tpu_custom_call.1} parent=1 // pred_check_branch
      %9 = sbr.rel (0) target = $region5
    $region4: #{tpu_custom_call.1} parent=1 // pred_region
      %11 = vsyncadd [#allocation3], 0
      %s13 = sshll.u32 %s0, 4
      %s14 = int_to_ptr.hbm [resolvable:$true] %s13
      %s15 = sshll.u32 [#allocation2], 4
      %s16 = int_to_ptr.vmem [resolvable:$true] %s15
      %18 = dma.hbm_to_vmem [thread:$0]  %s14, 256, %s16, [#allocation3]
    $region5: #{tpu_custom_call.1} parent=1 // pred_fallthru
      _
    // Predicated region
    $region6: #{tpu_custom_call.1} parent=1 // pred_check
      _
    $region7: #{tpu_custom_call.1} parent=1 // pred_check_branch
      %20 = sbr.rel (0) target = $region9
    $region8: #{tpu_custom_call.1} parent=1 // pred_region
      %22 = dma.done [#allocation3], 256
    $region9: #{tpu_custom_call.1} parent=1 // pred_fallthru
      _
    %v23 = vld [vmem:[#allocation2] sm:$0xff]
    %v24 = vld [vmem:[#allocation2 + $0x8] sm:$0xff]
    %v25 = vadd.f32 %v23, 0.05
    %v26 = vadd.f32 %v24, 0.05
    %v27 = vmax.f32 %v25, 0.0
    %v28 = vmax.f32 %v26, 0.0
    %v29 = vsub.f32 %v27, 0.05
    %v30 = vsub.f32 %v28, 0.05
    %31 = vst [vmem:[#allocation5] sm:$0xff] %v29
    %32 = vst [vmem:[#allocation5 + $0x8] sm:$0xff] %v30
    // Predicated region
    $region10: #{tpu_custom_call.1} parent=1 // pred_check
      _
    $region11: #{tpu_custom_call.1} parent=1 // pred_check_branch
      %34 = sbr.rel (0) target = $region13
    $region12: #{tpu_custom_call.1} parent=1 // pred_region
      %36 = vsyncadd [#allocation4], 0
      %s38 = sshll.u32 [#allocation5], 4
      %s39 = int_to_ptr.vmem [resolvable:$true] %s38
      %s40 = sshll.u32 %s1, 4
      %s41 = int_to_ptr.hbm [resolvable:$true] %s40
      %43 = dma.vmem_to_hbm [thread:$0]  %s39, 256, %s41, [#allocation4]
    $region13: #{tpu_custom_call.1} parent=1 // pred_fallthru
      _
    // Predicated region
    $region14: #{tpu_custom_call.1} parent=1 // pred_check
      _
    $region15: #{tpu_custom_call.1} parent=1 // pred_check_branch
      %45 = sbr.rel (0) target = $region17
    $region16: #{tpu_custom_call.1} parent=1 // pred_region
      %47 = dma.done [#allocation4], 256
    $region17: #{tpu_custom_call.1} parent=1 // pred_fallthru
      _
    %48 = vsyncpa [#allocation3], 1
    %49 = vsyncpa [#allocation4], 1

</llo_original>
